<compile_context>
chip_gen: v5e
topology: v5e:2x2
jax: 0.10.0
libtpu: 0.0.40
codegen_flags: <defaults>
</compile_context>

<pallas_src>
import math
import jax
import jax.numpy as jnp
from jax.experimental import pallas as pl
from jax.experimental.pallas import tpu as pltpu


# ----------------------------- Pallas kernel ---------------------------------
def posenc_kernel(wsp_ref, le_ref, w_wsp_ref, w_le_ref, b_wsp_ref, b_le_ref,
                  out_ref):
    # wsp_ref / le_ref   : (tile_n, max_nodes) f32   -- streamed row tiles
    # w_wsp_ref / w_le_ref: (max_nodes, d_half) f32  -- VMEM-resident weights
    # b_wsp_ref / b_le_ref: (1, d_half) f32          -- VMEM-resident biases
    # out_ref            : (tile_n, d_model) f32
    d_half = w_wsp_ref.shape[1]
    out_ref[:, :d_half] = (
        jnp.dot(wsp_ref[...], w_wsp_ref[...], preferred_element_type=jnp.float32)
        + b_wsp_ref[...]
    )
    out_ref[:, d_half:] = (
        jnp.dot(le_ref[...], w_le_ref[...], preferred_element_type=jnp.float32)
        + b_le_ref[...]
    )


def _round_up(x, m):
    return ((x + m - 1) // m) * m


def pos_encoding_pallas(wsp, le, w_wsp, b_wsp, w_le, b_le, *, tile_n=2048):
    """GraphBert positional encoding: concat([wsp@W1+b1, le@W2+b2], -1)."""
    n, mnodes = wsp.shape
    d_half = w_wsp.shape[1]
    d_model = 2 * d_half

    # Row tiling: multiple of 8 sublanes (f32); big tiles amortize the fixed
    # per-grid-step overhead; >=2 parallel steps once there is enough work so
    # v7x can shard rows across its 2 TensorCores.
    n_r = _round_up(max(n, 1), 8)
    if n_r >= 1024:
        tile = min(tile_n, _round_up(pl.cdiv(n_r, 2), 8))
    else:
        tile = min(tile_n, n_r)
    tile = max(tile, 8)
    n_pad = _round_up(n_r, tile)

    if n_pad != n:  # only pad when genuinely needed (extra XLA pass otherwise)
        pad = ((0, n_pad - n), (0, 0))
        wsp = jnp.pad(wsp, pad)
        le = jnp.pad(le, pad)

    b_wsp2 = b_wsp.reshape(1, d_half).astype(jnp.float32)
    b_le2 = b_le.reshape(1, d_half).astype(jnp.float32)

    out = pl.pallas_call(
        posenc_kernel,
        out_shape=jax.ShapeDtypeStruct((n_pad, d_model), jnp.float32),
        grid=(n_pad // tile,),
        in_specs=[
            pl.BlockSpec((tile, mnodes), lambda i: (i, 0)),     # wsp rows stream
            pl.BlockSpec((tile, mnodes), lambda i: (i, 0)),     # le rows stream
            pl.BlockSpec((mnodes, d_half), lambda i: (0, 0)),   # weights resident
            pl.BlockSpec((mnodes, d_half), lambda i: (0, 0)),
            pl.BlockSpec((1, d_half), lambda i: (0, 0)),        # biases resident
            pl.BlockSpec((1, d_half), lambda i: (0, 0)),
        ],
        out_specs=pl.BlockSpec((tile, d_model), lambda i: (i, 0)),
        compiler_params=pltpu.CompilerParams(
            dimension_semantics=("parallel",)),                  # v7x: 2 TCs
    )(wsp, le, w_wsp, w_le, b_wsp2, b_le2)

    if n_pad != n:
        out = out[:n]  # padded rows hold only the broadcast bias; drop them
    return out


# ------------------------- graph preprocessing (glue) -------------------------
# TODO(synk): networkx shortest-path loop + scipy.linalg.eigh have no Pallas
# equivalent; implemented as plain JAX (min-plus squaring + jnp.linalg.eigh).
def wsp_matrix_jax(adj, num_nodes, max_nodes):
    """All-pairs shortest path lengths (unweighted); unreachable -> max_nodes."""
    INF = 1e9
    eye = jnp.eye(num_nodes, dtype=bool)
    dist = jnp.where(adj > 0, 1.0, INF)
    dist = jnp.where(eye, 0.0, dist)

    def body(_, d):
        # min-plus squaring: d[i,j] = min_k d[i,k] + d[k,j]
        return jnp.min(d[:, :, None] + d[None, :, :], axis=1)

    n_iters = max(1, int(math.ceil(math.log2(max(num_nodes, 2)))))
    dist = jax.lax.fori_loop(0, n_iters, body, dist)
    dist = jnp.where(dist >= INF, float(max_nodes), dist)
    dist = jnp.where(eye, 0.0, dist)
    out = jnp.zeros((num_nodes, max_nodes), dtype=jnp.float32)
    return out.at[:, :num_nodes].set(dist.astype(jnp.float32))


def laplacian_eigvec_jax(adj, num_nodes, max_nodes):
    """Sym-normalized Laplacian eigenvectors, zero-padded to max_nodes cols."""
    deg = jnp.sum(adj, axis=1)
    d_inv_sqrt = jnp.where(deg > 0, 1.0 / jnp.sqrt(deg), 0.0)
    lap = jnp.eye(num_nodes) - d_inv_sqrt[:, None] * adj * d_inv_sqrt[None, :]
    # Eigenvector signs/ordering may differ from the scipy path; both are
    # valid eigenbases.
    _, eigvecs = jnp.linalg.eigh(lap)
    out = jnp.zeros((num_nodes, max_nodes), dtype=jnp.float32)
    return out.at[:, :num_nodes].set(eigvecs.astype(jnp.float32))


def edge_index_to_adj(edge_index, num_nodes):
    src, dst = edge_index[0], edge_index[1]
    adj = jnp.zeros((num_nodes, num_nodes), dtype=jnp.float32)
    adj = adj.at[src, dst].set(1.0)
    adj = adj.at[dst, src].set(1.0)            # undirected (nx.Graph)
    adj = adj * (1.0 - jnp.eye(num_nodes))     # no self loops
    return adj


# --------------------------------- driver ------------------------------------
if __name__ == "__main__":
    # small shapes consistent with the module
    max_nodes = 16
    d_model = 32
    d_half = d_model // 2
    num_nodes = 8

    key = jax.random.PRNGKey(0)
    k1, k2, k3, k4 = jax.random.split(key, 4)

    # deterministic parameter init (nn.Linear(max_nodes, d_model // 2) x 2);
    # weights stored pre-transposed as (in_features, out_features)
    bound = 1.0 / math.sqrt(max_nodes)
    w_wsp = jax.random.uniform(k1, (max_nodes, d_half), jnp.float32, -bound, bound)
    b_wsp = jax.random.uniform(k2, (d_half,), jnp.float32, -bound, bound)
    w_le = jax.random.uniform(k3, (max_nodes, d_half), jnp.float32, -bound, bound)
    b_le = jax.random.uniform(k4, (d_half,), jnp.float32, -bound, bound)

    # example graph: ring of num_nodes nodes, edge_index shape (2, E)
    src = jnp.arange(num_nodes, dtype=jnp.int32)
    dst = (src + 1) % num_nodes
    edge_index = jnp.stack([src, dst], axis=0)

    # graph preprocessing (glue, plain JAX)
    adj = edge_index_to_adj(edge_index, num_nodes)
    wsp = wsp_matrix_jax(adj, num_nodes, max_nodes)          # (N, max_nodes) f32
    le = laplacian_eigvec_jax(adj, num_nodes, max_nodes)     # (N, max_nodes) f32

    # Pallas kernel: dual-Linear + concat -> (N, d_model), all f32
    pos_encoding = pos_encoding_pallas(wsp, le, w_wsp, b_wsp, w_le, b_le)
    pos_encoding = jax.block_until_ready(pos_encoding)

    # f32 reference (same semantics as the PyTorch nn.Linear forward)
    ref = jnp.concatenate(
        [jnp.dot(wsp, w_wsp, precision=jax.lax.Precision.HIGHEST) + b_wsp,
         jnp.dot(le, w_le, precision=jax.lax.Precision.HIGHEST) + b_le],
        axis=-1)

    assert pos_encoding.shape == (num_nodes, d_model)
    assert jnp.allclose(pos_encoding, ref, atol=5e-2, rtol=1e-2)

    print("KERNEL_OK")
</pallas_src>

<mosaic_0001>
module attributes {stable_mosaic.version = 11 : i64} {
  func.func @posenc_kernel(%arg0: i32, %arg1: memref<8x16xf32, #tpu.memory_space<vmem>>, %arg2: memref<8x16xf32, #tpu.memory_space<vmem>>, %arg3: memref<16x16xf32, #tpu.memory_space<vmem>>, %arg4: memref<16x16xf32, #tpu.memory_space<vmem>>, %arg5: memref<1x16xf32, #tpu.memory_space<vmem>>, %arg6: memref<1x16xf32, #tpu.memory_space<vmem>>, %arg7: memref<8x32xf32, #tpu.memory_space<vmem>>) attributes {dimension_semantics = [#tpu.dimension_semantics<parallel>], iteration_bounds = array<i64: 1>, scalar_prefetch = 0 : i64, scratch_operands = 0 : i64, tpu.core_type = #tpu.core_type<tc>, window_params = [{transform_indices = @transform_0, window_bounds = array<i64: 8, 16>}, {transform_indices = @transform_1, window_bounds = array<i64: 8, 16>}, {pipeline_mode = #tpu.pipeline_mode<synchronous>, transform_indices = @transform_2, window_bounds = array<i64: 16, 16>}, {pipeline_mode = #tpu.pipeline_mode<synchronous>, transform_indices = @transform_3, window_bounds = array<i64: 16, 16>}, {pipeline_mode = #tpu.pipeline_mode<synchronous>, transform_indices = @transform_4, window_bounds = array<i64: 1, 16>}, {pipeline_mode = #tpu.pipeline_mode<synchronous>, transform_indices = @transform_5, window_bounds = array<i64: 1, 16>}, {transform_indices = @transform_6, window_bounds = array<i64: 8, 32>}]} {
    %c0 = arith.constant 0 : index
    %c0_0 = arith.constant 0 : index
    %0 = vector.load %arg1[%c0, %c0_0] : memref<8x16xf32, #tpu.memory_space<vmem>>, vector<8x16xf32>
    %c0_1 = arith.constant 0 : index
    %c0_2 = arith.constant 0 : index
    %1 = vector.load %arg3[%c0_1, %c0_2] : memref<16x16xf32, #tpu.memory_space<vmem>>, vector<16x16xf32>
    %cst = arith.constant dense<0.000000e+00> : vector<8x16xf32>
    %2 = tpu.matmul %0, %1, %cst {dimension_numbers = #tpu.dot_dimension_numbers<[1], [0], [0], [1], [0, 0, 1, 1], [], []>} : vector<8x16xf32>, vector<16x16xf32>, vector<8x16xf32> -> vector<8x16xf32>
    %c0_3 = arith.constant 0 : index
    %c0_4 = arith.constant 0 : index
    %3 = vector.load %arg5[%c0_3, %c0_4] : memref<1x16xf32, #tpu.memory_space<vmem>>, vector<1x16xf32>
    %4 = vector.broadcast %3 : vector<1x16xf32> to vector<8x16xf32>
    %5 = arith.addf %2, %4 : vector<8x16xf32>
    %c0_5 = arith.constant 0 : index
    %c0_6 = arith.constant 0 : index
    %6 = vector.load %arg7[%c0_5, %c0_6] : memref<8x32xf32, #tpu.memory_space<vmem>>, vector<8x16xf32>
    tpu.vector_store %arg7[%c0_5, %c0_6], %5 {strides = array<i32>} : memref<8x32xf32, #tpu.memory_space<vmem>>, vector<8x16xf32>,
    %c0_7 = arith.constant 0 : index
    %c0_8 = arith.constant 0 : index
    %7 = vector.load %arg2[%c0_7, %c0_8] : memref<8x16xf32, #tpu.memory_space<vmem>>, vector<8x16xf32>
    %c0_9 = arith.constant 0 : index
    %c0_10 = arith.constant 0 : index
    %8 = vector.load %arg4[%c0_9, %c0_10] : memref<16x16xf32, #tpu.memory_space<vmem>>, vector<16x16xf32>
    %cst_11 = arith.constant dense<0.000000e+00> : vector<8x16xf32>
    %9 = tpu.matmul %7, %8, %cst_11 {dimension_numbers = #tpu.dot_dimension_numbers<[1], [0], [0], [1], [0, 0, 1, 1], [], []>} : vector<8x16xf32>, vector<16x16xf32>, vector<8x16xf32> -> vector<8x16xf32>
    %c0_12 = arith.constant 0 : index
    %c0_13 = arith.constant 0 : index
    %10 = vector.load %arg6[%c0_12, %c0_13] : memref<1x16xf32, #tpu.memory_space<vmem>>, vector<1x16xf32>
    %11 = vector.broadcast %10 : vector<1x16xf32> to vector<8x16xf32>
    %12 = arith.addf %9, %11 : vector<8x16xf32>
    %c0_14 = arith.constant 0 : index
    %c16 = arith.constant 16 : index
    %13 = vector.load %arg7[%c0_14, %c16] : memref<8x32xf32, #tpu.memory_space<vmem>>, vector<8x16xf32>
    tpu.vector_store %arg7[%c0_14, %c16], %12 {strides = array<i32>} : memref<8x32xf32, #tpu.memory_space<vmem>>, vector<8x16xf32>,
    return
  }
  func.func @transform_0(%arg0: i32) -> (i32, i32) {
    %c0_i32 = arith.constant 0 : i32
    %c0_i32_0 = arith.constant 0 : i32
    return %arg0, %c0_i32 : i32, i32
  }
  func.func @transform_1(%arg0: i32) -> (i32, i32) {
    %c0_i32 = arith.constant 0 : i32
    %c0_i32_0 = arith.constant 0 : i32
    return %arg0, %c0_i32 : i32, i32
  }
  func.func @transform_2(%arg0: i32) -> (i32, i32) {
    %c0_i32 = arith.constant 0 : i32
    %c0_i32_0 = arith.constant 0 : i32
    %c0_i32_1 = arith.constant 0 : i32
    return %c0_i32, %c0_i32_0 : i32, i32
  }
  func.func @transform_3(%arg0: i32) -> (i32, i32) {
    %c0_i32 = arith.constant 0 : i32
    %c0_i32_0 = arith.constant 0 : i32
    %c0_i32_1 = arith.constant 0 : i32
    return %c0_i32, %c0_i32_0 : i32, i32
  }
  func.func @transform_4(%arg0: i32) -> (i32, i32) {
    %c0_i32 = arith.constant 0 : i32
    %c0_i32_0 = arith.constant 0 : i32
    %c0_i32_1 = arith.constant 0 : i32
    return %c0_i32, %c0_i32_0 : i32, i32
  }
  func.func @transform_5(%arg0: i32) -> (i32, i32) {
    %c0_i32 = arith.constant 0 : i32
    %c0_i32_0 = arith.constant 0 : i32
    %c0_i32_1 = arith.constant 0 : i32
    return %c0_i32, %c0_i32_0 : i32, i32
  }
  func.func @transform_6(%arg0: i32) -> (i32, i32) {
    %c0_i32 = arith.constant 0 : i32
    %c0_i32_0 = arith.constant 0 : i32
    return %arg0, %c0_i32 : i32, i32
  }
}

</mosaic_0001>

<llo_original>
// kernel: tpu_custom_call.1
$region0: #{tpu_custom_call.1}
  #allocation0 [shape = 'u32[]', space=smem, size = 0x4, offset = 0x4, fixed_abs, tag = 'smem constant byte address 0x4 - core index']
  #allocation1 [shape = 'u32[72,128]{1,0:T(1,128)}', space=vmem, size = 0x9000, scoped, tag = 'internal scratch']
  %s0 = inlined_call_operand.hbm [shape: f32[8,16], index: 0, kind: input, shape index: {}]
  %s1 = inlined_call_operand.hbm [shape: f32[8,16], index: 1, kind: input, shape index: {}]
  %s2 = inlined_call_operand.hbm [shape: f32[16,16], index: 2, kind: input, shape index: {}]
  %s3 = inlined_call_operand.hbm [shape: f32[16,16], index: 3, kind: input, shape index: {}]
  %s4 = inlined_call_operand.vmem [shape: f32[1,16], index: 4, kind: input, shape index: {}]
  %s5 = inlined_call_operand.vmem [shape: f32[1,16], index: 5, kind: input, shape index: {}]
  %s6 = inlined_call_operand.hbm [shape: f32[8,32], index: 6, kind: output, shape index: {}]
  %s7 = sld [smem:[#allocation0]]
  $region50: #{tpu_custom_call.1} parent=0
    _
  %s9 = ssub.s32 1, %s7
  %s10 = scalar_select 0, %s9, %s7
  $region1: #{tpu_custom_call.1} parent=0
    #allocation2 [shape = 'u8[4096]{0}', space=vmem, size = 0x1000, scoped, tag = 'input window, operand 0, single buffered']
    #allocation3 [shape = 's32[1]{0}', space=sflag, size = 0x4, scoped, tag = 'scoped memory for tpu_custom_call.1']
    #allocation4 [shape = 's32[1]{0}', space=sflag, size = 0x4, scoped, tag = 'scoped memory for tpu_custom_call.1']
    #allocation5 [shape = 'u8[4096]{0}', space=vmem, size = 0x1000, scoped, tag = 'input window, operand 1, single buffered']
    #allocation6 [shape = 's32[1]{0}', space=sflag, size = 0x4, scoped, tag = 'scoped memory for tpu_custom_call.1']
    #allocation7 [shape = 'u8[8192]{0}', space=vmem, size = 0x2000, scoped, tag = 'input window, operand 2, single buffered']
    #allocation8 [shape = 'u8[8192]{0}', space=vmem, size = 0x2000, scoped, tag = 'input window, operand 3, single buffered']
    #allocation9 [shape = 's32[1]{0}', space=sflag, size = 0x4, scoped, tag = 'scoped memory for tpu_custom_call.1']
    #allocation10 [shape = 'u8[4096]{0}', space=vmem, size = 0x1000, scoped, tag = 'output window, operand 0, single buffered']
    %11 = vsyncpa [#allocation3], 0
    %12 = vsyncpa [#allocation6], 0
    %13 = vsyncpa [#allocation9], 0
    %14 = vsyncpa [#allocation4], 0
    // Predicated region
    $region2: #{tpu_custom_call.1} parent=1 // pred_check
      _
    $region3: #{tpu_custom_call.1} parent=1 // pred_check_branch
      %16 = sbr.rel (0) target = $region5
    $region4: #{tpu_custom_call.1} parent=1 // pred_region
      %18 = vsyncadd [#allocation3], 0
      %s20 = sshll.u32 %s0, 4
      %s21 = int_to_ptr.hbm [resolvable:$true] %s20
      %s22 = sshll.u32 [#allocation2], 4
      %s23 = int_to_ptr.vmem [resolvable:$true] %s22
      %25 = dma.hbm_to_vmem [thread:$0]  %s21, 128, %s23, [#allocation3]
    $region5: #{tpu_custom_call.1} parent=1 // pred_fallthru
      _
    // Predicated region
    $region6: #{tpu_custom_call.1} parent=1 // pred_check
      _
    $region7: #{tpu_custom_call.1} parent=1 // pred_check_branch
      %27 = sbr.rel (0) target = $region9
    $region8: #{tpu_custom_call.1} parent=1 // pred_region
      %29 = vsyncadd [#allocation6], 0
      %s31 = sshll.u32 %s1, 4
      %s32 = int_to_ptr.hbm [resolvable:$true] %s31
      %s33 = sshll.u32 [#allocation5], 4
      %s34 = int_to_ptr.vmem [resolvable:$true] %s33
      %36 = dma.hbm_to_vmem [thread:$0]  %s32, 128, %s34, [#allocation6]
    $region9: #{tpu_custom_call.1} parent=1 // pred_fallthru
      _
    // Predicated region
    $region10: #{tpu_custom_call.1} parent=1 // pred_check
      _
    $region11: #{tpu_custom_call.1} parent=1 // pred_check_branch
      %38 = sbr.rel (0) target = $region13
    $region12: #{tpu_custom_call.1} parent=1 // pred_region
      %40 = vsyncadd [#allocation6], 0
      %s41 = sshll.u32 %s2, 4
      %s42 = int_to_ptr.hbm [resolvable:$true] %s41
      %s43 = sshll.u32 [#allocation7], 4
      %s44 = int_to_ptr.vmem [resolvable:$true] %s43
      %49 = dma.hbm_to_vmem [thread:$0]  %s42, 256, %s44, [#allocation6], 128, 128, 8
    $region13: #{tpu_custom_call.1} parent=1 // pred_fallthru
      _
    // Predicated region
    $region14: #{tpu_custom_call.1} parent=1 // pred_check
      _
    $region15: #{tpu_custom_call.1} parent=1 // pred_check_branch
      %51 = sbr.rel (0) target = $region17
    $region16: #{tpu_custom_call.1} parent=1 // pred_region
      %53 = vsyncadd [#allocation9], 0
      %s54 = sshll.u32 %s3, 4
      %s55 = int_to_ptr.hbm [resolvable:$true] %s54
      %s56 = sshll.u32 [#allocation8], 4
      %s57 = int_to_ptr.vmem [resolvable:$true] %s56
      %62 = dma.hbm_to_vmem [thread:$0]  %s55, 256, %s57, [#allocation9], 128, 128, 8
    $region17: #{tpu_custom_call.1} parent=1 // pred_fallthru
      _
    // Predicated region
    $region18: #{tpu_custom_call.1} parent=1 // pred_check
      _
    $region19: #{tpu_custom_call.1} parent=1 // pred_check_branch
      %64 = sbr.rel (0) target = $region21
    $region20: #{tpu_custom_call.1} parent=1 // pred_region
      _
    $region21: #{tpu_custom_call.1} parent=1 // pred_fallthru
      _
    // Predicated region
    $region22: #{tpu_custom_call.1} parent=1 // pred_check
      _
    $region23: #{tpu_custom_call.1} parent=1 // pred_check_branch
      %66 = sbr.rel (0) target = $region25
    $region24: #{tpu_custom_call.1} parent=1 // pred_region
      _
    $region25: #{tpu_custom_call.1} parent=1 // pred_fallthru
      _
    // Predicated region
    $region26: #{tpu_custom_call.1} parent=1 // pred_check
      _
    $region27: #{tpu_custom_call.1} parent=1 // pred_check_branch
      %68 = sbr.rel (0) target = $region29
    $region28: #{tpu_custom_call.1} parent=1 // pred_region
      %70 = dma.done [#allocation3], 128
    $region29: #{tpu_custom_call.1} parent=1 // pred_fallthru
      _
    // Predicated region
    $region30: #{tpu_custom_call.1} parent=1 // pred_check
      _
    $region31: #{tpu_custom_call.1} parent=1 // pred_check_branch
      %72 = sbr.rel (0) target = $region33
    $region32: #{tpu_custom_call.1} parent=1 // pred_region
      %74 = dma.done [#allocation6], 128
    $region33: #{tpu_custom_call.1} parent=1 // pred_fallthru
      _
    // Predicated region
    $region34: #{tpu_custom_call.1} parent=1 // pred_check
      _
    $region35: #{tpu_custom_call.1} parent=1 // pred_check_branch
      %76 = sbr.rel (0) target = $region37
    $region36: #{tpu_custom_call.1} parent=1 // pred_region
      %78 = dma.done [#allocation6], 256
    $region37: #{tpu_custom_call.1} parent=1 // pred_fallthru
      _
    // Predicated region
    $region38: #{tpu_custom_call.1} parent=1 // pred_check
      _
    $region39: #{tpu_custom_call.1} parent=1 // pred_check_branch
      %80 = sbr.rel (0) target = $region41
    $region40: #{tpu_custom_call.1} parent=1 // pred_region
      %82 = dma.done [#allocation9], 256
    $region41: #{tpu_custom_call.1} parent=1 // pred_fallthru
      _
    %v83 = vld [vmem:[#allocation2] sm:$0xff]
    %v84 = vld [vmem:[#allocation7] sm:$0xff]
    %v85 = vld [vmem:[#allocation7 + $0x8] sm:$0xff]
    %v86 = vld [vmem:[%s4] sm:$0x1]
    %v88 = vperm.slane %v86, 0
    %vm90 = vcmask 130048
    %v92 = vsel %vm90, %v83, 0
    %94 = vmatpush.msra.mxu0 0.0
    %95 = vmatpush.msra.mxu0 0.0
    %96 = vmatpush.msra.mxu0 0.0
    %97 = vmatpush.msra.mxu0 0.0
    %98 = vmatpush.msra.mxu0 0.0
    %99 = vmatpush.msra.mxu0 0.0
    %100 = vmatpush.msra.mxu0 0.0
    %101 = vmatpush.msra.mxu0 0.0
    %102 = vmatpush.msra.mxu0 0.0
    %103 = vmatpush.msra.mxu0 0.0
    %104 = vmatpush.msra.mxu0 0.0
    %105 = vmatpush.msra.mxu0 0.0
    %106 = vmatpush.msra.mxu0 0.0
    %107 = vmatpush.msra.mxu0 0.0
    %108 = vmatpush.msra.mxu0 %v85
    %109 = vmatpush.msra.mxu0 %v84
    %110 = vmatmul.f32.gmra.mxu0 %v92
    %v111 = vpop.f32.mrf.mxu0
    %v112 = vadd.f32 %v88, %v111
    %113 = vdwg.mxu0
    %114 = vst.msk [vmem:[#allocation10] sm:$0xff] %vm90, %v112
    %v115 = vld [vmem:[#allocation5] sm:$0xff]
    %v116 = vld [vmem:[#allocation8] sm:$0xff]
    %v117 = vld [vmem:[#allocation8 + $0x8] sm:$0xff]
    %v118 = vld [vmem:[%s5] sm:$0x1]
    %v120 = vperm.slane %v118, 0
    %v123 = vsel %vm90, %v115, 0
    %125 = vmatpush.msra.mxu0 0.0
    %126 = vmatpush.msra.mxu0 0.0
    %127 = vmatpush.msra.mxu0 0.0
    %128 = vmatpush.msra.mxu0 0.0
    %129 = vmatpush.msra.mxu0 0.0
    %130 = vmatpush.msra.mxu0 0.0
    %131 = vmatpush.msra.mxu0 0.0
    %132 = vmatpush.msra.mxu0 0.0
    %133 = vmatpush.msra.mxu0 0.0
    %134 = vmatpush.msra.mxu0 0.0
    %135 = vmatpush.msra.mxu0 0.0
    %136 = vmatpush.msra.mxu0 0.0
    %137 = vmatpush.msra.mxu0 0.0
    %138 = vmatpush.msra.mxu0 0.0
    %139 = vmatpush.msra.mxu0 %v117
    %140 = vmatpush.msra.mxu0 %v116
    %141 = vmatmul.f32.gmra.mxu0 %v123
    %v142 = vpop.f32.mrf.mxu0
    %v143 = vadd.f32 %v120, %v142
    %144 = vdwg.mxu0
    %146 = vrot.lane.b32.xlu0 %v143, 16
    %v147 = vpop.permute.xlu0 %146
    %vm149 = vcmask 261248
    %150 = vst.msk [vmem:[#allocation10] sm:$0xff] %vm149, %v147
    // Predicated region
    $region42: #{tpu_custom_call.1} parent=1 // pred_check
      _
    $region43: #{tpu_custom_call.1} parent=1 // pred_check_branch
      %152 = sbr.rel (0) target = $region45
    $region44: #{tpu_custom_call.1} parent=1 // pred_region
      %154 = vsyncadd [#allocation4], 0
      %s156 = sshll.u32 [#allocation10], 4
      %s157 = int_to_ptr.vmem [resolvable:$true] %s156
      %s158 = sshll.u32 %s6, 4
      %s159 = int_to_ptr.hbm [resolvable:$true] %s158
      %161 = dma.vmem_to_hbm [thread:$0]  %s157, 128, %s159, [#allocation4]
    $region45: #{tpu_custom_call.1} parent=1 // pred_fallthru
      _
    // Predicated region
    $region46: #{tpu_custom_call.1} parent=1 // pred_check
      _
    $region47: #{tpu_custom_call.1} parent=1 // pred_check_branch
      %163 = sbr.rel (0) target = $region49
    $region48: #{tpu_custom_call.1} parent=1 // pred_region
      %165 = dma.done [#allocation4], 128
    $region49: #{tpu_custom_call.1} parent=1 // pred_fallthru
      _
    %166 = vsyncpa [#allocation3], 1
    %167 = vsyncpa [#allocation6], 1
    %168 = vsyncpa [#allocation9], 1
    %169 = vsyncpa [#allocation4], 1

</llo_original>
